<compile_context>
chip_gen: v5e
topology: v5e:2x2
jax: 0.10.0
libtpu: 0.0.40
codegen_flags: <defaults>
</compile_context>

<pallas_src>
import functools

import jax
import jax.numpy as jnp
from jax.experimental import pallas as pl
from jax.experimental.pallas import tpu as pltpu

# Scaled-down versions of window_size=131072 / step_size=65536 (same 2:1 ratio).
WINDOW_SIZE = 512
STEP_SIZE = 256
assert WINDOW_SIZE == 2 * STEP_SIZE


# ----------------------------------------------------------------------------
# Fused kernel: unfold + (identity model) + hann overlap-add, per output block.
#   x_ref, out_ref : (2, blocks_per_tile, step)   lane = step, sublane = blocks
#   head_ref       : (1, step)  hann[:step]
#   tail_ref       : (1, step)  hann[step:]
# ----------------------------------------------------------------------------
def _fused_separator_kernel(x_ref, head_ref, tail_ref, out_ref, *,
                            blocks_per_tile, n_chunks):
    j0 = pl.program_id(0) * blocks_per_tile
    step = x_ref.shape[-1]

    # Global step-block index of every sublane row in this tile.
    row = jax.lax.broadcasted_iota(jnp.int32, (blocks_per_tile, step), 0) + j0

    # chunk j   contributes its hann head to output block j  (j <  n_chunks)
    # chunk j-1 contributes its hann tail to output block j  (j >= 1)
    w_head = jnp.where(row < n_chunks, head_ref[0], 0.0)   # (TB, step)
    w_tail = jnp.where(row >= 1,       tail_ref[0], 0.0)   # (TB, step)

    x = x_ref[...]                                          # (2, TB, step)
    out_ref[...] = x * w_head + x * w_tail


# ----------------------------------------------------------------------------
# Separator.forward equivalent
# ----------------------------------------------------------------------------
def separator_forward(raw_audio, *, blocks_per_tile=8):
    """raw_audio: (2, duration) float32 -> (2, duration) float32."""
    c, duration = raw_audio.shape
    if c != 2:
        raise ValueError("Input tensor should have dimensions of (2, t)")

    step, window = STEP_SIZE, WINDOW_SIZE
    x = raw_audio.astype(jnp.float32)

    # pre_process_data padding: pad to a multiple of step_size.
    t_pad = duration + ((-duration) % step)
    n_chunks = (t_pad - window) // step + 1          # number of overlapping chunks
    n_out_blocks = t_pad // step                     # OLA output length == t_pad

    # Extra zero-padding only so the grid tiles evenly; weights for the fake
    # trailing blocks are irrelevant (input there is zero and it is sliced off).
    n_tiles = pl.cdiv(n_out_blocks, blocks_per_tile)
    n_blocks_padded = n_tiles * blocks_per_tile
    x_padded = jnp.pad(x, ((0, 0), (0, n_blocks_padded * step - duration)))
    x3 = x_padded.reshape(2, n_blocks_padded, step)  # pure reshape, no copy

    # Periodic hann window (torch.hann_window default), split into halves.
    n = jnp.arange(window, dtype=jnp.float32)
    hann = 0.5 * (1.0 - jnp.cos(2.0 * jnp.pi * n / window))
    hann_head = hann[:step].reshape(1, step)
    hann_tail = hann[step:].reshape(1, step)

    kernel = functools.partial(_fused_separator_kernel,
                               blocks_per_tile=blocks_per_tile,
                               n_chunks=n_chunks)

    out3 = pl.pallas_call(
        kernel,
        out_shape=jax.ShapeDtypeStruct((2, n_blocks_padded, step), jnp.float32),
        grid=(n_tiles,),
        in_specs=[
            pl.BlockSpec((2, blocks_per_tile, step), lambda i: (0, i, 0)),
            pl.BlockSpec((1, step), lambda i: (0, 0)),
            pl.BlockSpec((1, step), lambda i: (0, 0)),
        ],
        out_specs=pl.BlockSpec((2, blocks_per_tile, step), lambda i: (0, i, 0)),
        compiler_params=pltpu.CompilerParams(
            dimension_semantics=("parallel",)),
    )(x3, hann_head, hann_tail)

    out = out3.reshape(2, n_blocks_padded * step)
    return out[:, :duration]


# ----------------------------------------------------------------------------
# Pure-JAX reference (mirrors the torch code: explicit unfold, identity model,
# loop-based hann overlap-add) for a correctness check.
# ----------------------------------------------------------------------------
def separator_reference(raw_audio):
    c, duration = raw_audio.shape
    step, window = STEP_SIZE, WINDOW_SIZE
    padding = (-duration) % step
    xp = jnp.pad(raw_audio.astype(jnp.float32), ((0, 0), (0, padding)))
    t_pad = xp.shape[1]
    iters = (t_pad - window) // step + 1
    frames = jnp.stack(
        [xp[:, i * step:i * step + window] for i in range(iters)])  # (b, 2, W)
    n = jnp.arange(window, dtype=jnp.float32)
    hann = 0.5 * (1.0 - jnp.cos(2.0 * jnp.pi * n / window))
    total = window + (iters - 1) * step
    yn = jnp.zeros((2, total), jnp.float32)
    for i in range(iters):
        yn = yn.at[:, i * step:i * step + window].add(frames[i] * hann)
    return yn[:, :duration]


if __name__ == "__main__":
    key = jax.random.PRNGKey(0)
    duration = 10000  # pads to 10240 -> 39 chunks, 40 output step-blocks, grid=5
    raw_audio = jax.random.normal(key, (2, duration), dtype=jnp.float32)

    out = separator_forward(raw_audio)
    out = jax.block_until_ready(out)

    ref = separator_reference(raw_audio)
    assert out.shape == (2, duration), out.shape
    assert jnp.allclose(out, ref, atol=1e-5, rtol=1e-5), float(
        jnp.max(jnp.abs(out - ref)))

    print("KERNEL_OK")
</pallas_src>

<mosaic_0001>
module attributes {stable_mosaic.version = 11 : i64} {
  func.func @_fused_separator_kernel(%arg0: i32, %arg1: memref<2x8x256xf32, #tpu.memory_space<vmem>>, %arg2: memref<1x256xf32, #tpu.memory_space<vmem>>, %arg3: memref<1x256xf32, #tpu.memory_space<vmem>>, %arg4: memref<2x8x256xf32, #tpu.memory_space<vmem>>) attributes {dimension_semantics = [#tpu.dimension_semantics<parallel>], iteration_bounds = array<i64: 5>, scalar_prefetch = 0 : i64, scratch_operands = 0 : i64, tpu.core_type = #tpu.core_type<tc>, window_params = [{transform_indices = @transform_0, window_bounds = array<i64: 2, 8, 256>}, {pipeline_mode = #tpu.pipeline_mode<synchronous>, transform_indices = @transform_1, window_bounds = array<i64: 1, 256>}, {pipeline_mode = #tpu.pipeline_mode<synchronous>, transform_indices = @transform_2, window_bounds = array<i64: 1, 256>}, {transform_indices = @transform_3, window_bounds = array<i64: 2, 8, 256>}]} {
    %c8_i32 = arith.constant 8 : i32
    %0 = arith.muli %arg0, %c8_i32 : i32
    %1 = tpu.iota {dimensions = array<i32: 0>} : vector<8x256xi32>
    %2 = vector.broadcast %0 : i32 to vector<8x256xi32>
    %3 = arith.addi %1, %2 : vector<8x256xi32>
    %c39_i32 = arith.constant 39 : i32
    %4 = vector.broadcast %c39_i32 : i32 to vector<8x256xi32>
    %5 = arith.cmpi slt, %3, %4 : vector<8x256xi32>
    %c0 = arith.constant 0 : index
    %c0_0 = arith.constant 0 : index
    %6 = vector.load %arg2[%c0, %c0_0] : memref<1x256xf32, #tpu.memory_space<vmem>>, vector<1x256xf32>
    %7 = vector.shape_cast %6 : vector<1x256xf32> to vector<256xf32>
    %cst = arith.constant 0.000000e+00 : f32
    %8 = vector.shape_cast %7 : vector<256xf32> to vector<1x256xf32>
    %9 = vector.broadcast %8 : vector<1x256xf32> to vector<8x256xf32>
    %10 = vector.broadcast %cst : f32 to vector<8x256xf32>
    %11 = arith.select %5, %9, %10 : vector<8x256xi1>, vector<8x256xf32>
    %c1_i32 = arith.constant 1 : i32
    %12 = vector.broadcast %c1_i32 : i32 to vector<8x256xi32>
    %13 = arith.cmpi sge, %3, %12 : vector<8x256xi32>
    %c0_1 = arith.constant 0 : index
    %c0_2 = arith.constant 0 : index
    %14 = vector.load %arg3[%c0_1, %c0_2] : memref<1x256xf32, #tpu.memory_space<vmem>>, vector<1x256xf32>
    %15 = vector.shape_cast %14 : vector<1x256xf32> to vector<256xf32>
    %cst_3 = arith.constant 0.000000e+00 : f32
    %16 = vector.shape_cast %15 : vector<256xf32> to vector<1x256xf32>
    %17 = vector.broadcast %16 : vector<1x256xf32> to vector<8x256xf32>
    %18 = vector.broadcast %cst_3 : f32 to vector<8x256xf32>
    %19 = arith.select %13, %17, %18 : vector<8x256xi1>, vector<8x256xf32>
    %c0_4 = arith.constant 0 : index
    %c0_5 = arith.constant 0 : index
    %c0_6 = arith.constant 0 : index
    %20 = vector.load %arg1[%c0_4, %c0_5, %c0_6] : memref<2x8x256xf32, #tpu.memory_space<vmem>>, vector<2x8x256xf32>
    %21 = vector.shape_cast %11 : vector<8x256xf32> to vector<1x8x256xf32>
    %22 = vector.broadcast %21 : vector<1x8x256xf32> to vector<2x8x256xf32>
    %23 = arith.mulf %20, %22 : vector<2x8x256xf32>
    %24 = vector.shape_cast %19 : vector<8x256xf32> to vector<1x8x256xf32>
    %25 = vector.broadcast %24 : vector<1x8x256xf32> to vector<2x8x256xf32>
    %26 = arith.mulf %20, %25 : vector<2x8x256xf32>
    %27 = arith.addf %23, %26 : vector<2x8x256xf32>
    %c0_7 = arith.constant 0 : index
    %c0_8 = arith.constant 0 : index
    %c0_9 = arith.constant 0 : index
    %28 = vector.load %arg4[%c0_7, %c0_8, %c0_9] : memref<2x8x256xf32, #tpu.memory_space<vmem>>, vector<2x8x256xf32>
    tpu.vector_store %arg4[%c0_7, %c0_8, %c0_9], %27 {strides = array<i32>} : memref<2x8x256xf32, #tpu.memory_space<vmem>>, vector<2x8x256xf32>,
    return
  }
  func.func @transform_0(%arg0: i32) -> (i32, i32, i32) {
    %c0_i32 = arith.constant 0 : i32
    %c0_i32_0 = arith.constant 0 : i32
    %c0_i32_1 = arith.constant 0 : i32
    return %c0_i32, %arg0, %c0_i32_0 : i32, i32, i32
  }
  func.func @transform_1(%arg0: i32) -> (i32, i32) {
    %c0_i32 = arith.constant 0 : i32
    %c0_i32_0 = arith.constant 0 : i32
    %c0_i32_1 = arith.constant 0 : i32
    return %c0_i32, %c0_i32_0 : i32, i32
  }
  func.func @transform_2(%arg0: i32) -> (i32, i32) {
    %c0_i32 = arith.constant 0 : i32
    %c0_i32_0 = arith.constant 0 : i32
    %c0_i32_1 = arith.constant 0 : i32
    return %c0_i32, %c0_i32_0 : i32, i32
  }
  func.func @transform_3(%arg0: i32) -> (i32, i32, i32) {
    %c0_i32 = arith.constant 0 : i32
    %c0_i32_0 = arith.constant 0 : i32
    %c0_i32_1 = arith.constant 0 : i32
    return %c0_i32, %arg0, %c0_i32_0 : i32, i32, i32
  }
}

</mosaic_0001>

<llo_original>
// kernel: tpu_custom_call.1
$region0: #{tpu_custom_call.1}
  #allocation0 [shape = 'u32[]', space=smem, size = 0x4, offset = 0x4, fixed_abs, tag = 'smem constant byte address 0x4 - core index']
  #allocation1 [shape = 'u32[72,128]{1,0:T(1,128)}', space=vmem, size = 0x9000, scoped, tag = 'internal scratch']
  %s0 = inlined_call_operand.hbm [shape: f32[2,40,256], index: 0, kind: input, shape index: {}]
  %s1 = inlined_call_operand.hbm [shape: f32[1,256], index: 1, kind: input, shape index: {}]
  %s2 = inlined_call_operand.hbm [shape: f32[1,256], index: 2, kind: input, shape index: {}]
  %s3 = inlined_call_operand.hbm [shape: f32[2,40,256], index: 3, kind: output, shape index: {}]
  %s4 = sld [smem:[#allocation0]]
  $region57: #{tpu_custom_call.1} parent=0
    _
  %s6 = ssub.s32 1, %s4
  %s7 = scalar_select 0, %s6, %s4
  $region1: #{tpu_custom_call.1} parent=0
    #allocation2 [shape = 'u8[32768]{0}', space=vmem, size = 0x8000, scoped, tag = 'input window, operand 0']
    #allocation3 [shape = 's32[2]{0}', space=sflag, size = 0x8, scoped, tag = 'scoped memory for tpu_custom_call.1']
    #allocation4 [shape = 's32[2]{0}', space=sflag, size = 0x8, scoped, tag = 'scoped memory for tpu_custom_call.1']
    #allocation5 [shape = 'u8[1024]{0}', space=vmem, size = 0x400, scoped, tag = 'input window, operand 1, single buffered']
    #allocation6 [shape = 's32[1]{0}', space=sflag, size = 0x4, scoped, tag = 'scoped memory for tpu_custom_call.1']
    #allocation7 [shape = 'u8[1024]{0}', space=vmem, size = 0x400, scoped, tag = 'input window, operand 2, single buffered']
    #allocation8 [shape = 'u8[32768]{0}', space=vmem, size = 0x8000, scoped, tag = 'output window, operand 0']
    %8 = vsyncpa [#allocation3], 0
    %s9 = scalar_lea.sflag [#allocation3], 1
    %10 = vsyncpa %s9, 0
    %11 = vsyncpa [#allocation6], 0
    %12 = vsyncpa [#allocation4], 0
    %s13 = scalar_lea.sflag [#allocation4], 1
    %14 = vsyncpa %s13, 0
    loop: start=0, step=1, limit=7
    $region2: #{tpu_custom_call.1} parent=1 // loop_pre_header
      _
    $region3: #{tpu_custom_call.1} parent=1 // loop_header
      %s16 = sphi 0, %s20
      %p17 = scmp.ge.s32.totalorder %s16, 7
      %s26 = sphi 0, %s28
      %s29 = sphi 0, %s26
      %s30 = sphi 0, %s29
      %s46 = sphi 0, %s30
      %s50 = sphi 0, %s50
      %s52 = sphi 0, %s50
      %s53 = sphi 0, %s52
      %s67 = sphi 0, %s53
      %s71 = sphi 0, %s71
      %s73 = sphi 0, %s71
      %s74 = sphi 0, %s73
      %s88 = sphi 0, %s74
      %s94 = sphi 0, %s96
      %s97 = sphi 0, %s94
      %s98 = sphi 0, %s97
      %s114 = sphi 0, %s98
    $region4: #{tpu_custom_call.1} parent=1 // loop_header_branch
      %19 = sbr.rel (%p17) target = $region8
    $region5: #{tpu_custom_call.1} parent=1 // loop_body
      %s21 = ssub.s32 %s16, 1
      %s22 = ssub.s32 %s16, 2
      %s23 = sadd.s32 %s16, 1
      %s24 = ssub.s32 %s16, %s23
      %p25 = scmp.eq.s32.totalorder %s24, 0
      %s27 = sadd.s32 %s26, 1
      %s28 = scalar_select %p25, %s26, %s27
      %p31 = pneg %p25
      %p32 = scmp.eq.s32.totalorder %s16, 4
      %p33 = por %p31, %p32
      %p34 = scmp.ne.s32.totalorder %s26, %s29
      %p35 = scmp.eq.s32.totalorder %s16, 0
      %p36 = por %p34, %p35
      %p37 = scmp.ne.s32.totalorder %s26, %s29
      %p38 = scmp.eq.s32.totalorder %s21, 4
      %p39 = por %p37, %p38
      %p40 = scmp.ne.s32.totalorder %s29, %s30
      %p41 = scmp.eq.s32.totalorder %s21, 0
      %p42 = por %p40, %p41
      %p43 = scmp.ne.s32.totalorder %s29, %s30
      %p44 = scmp.eq.s32.totalorder %s22, 4
      %p45 = por %p43, %p44
      %p47 = scmp.ne.s32.totalorder %s30, %s46
      %p48 = scmp.eq.s32.totalorder %s22, 0
      %p49 = por %p47, %p48
      %s51 = sadd.s32 %s50, 1
      %p54 = scmp.eq.s32.totalorder %s16, 4
      %p55 = scmp.ne.s32.totalorder %s50, %s52
      %p56 = scmp.eq.s32.totalorder %s16, 0
      %p57 = por %p55, %p56
      %p58 = scmp.ne.s32.totalorder %s50, %s52
      %p59 = scmp.eq.s32.totalorder %s21, 4
      %p60 = por %p58, %p59
      %p61 = scmp.ne.s32.totalorder %s52, %s53
      %p62 = scmp.eq.s32.totalorder %s21, 0
      %p63 = por %p61, %p62
      %p64 = scmp.ne.s32.totalorder %s52, %s53
      %p65 = scmp.eq.s32.totalorder %s22, 4
      %p66 = por %p64, %p65
      %p68 = scmp.ne.s32.totalorder %s53, %s67
      %p69 = scmp.eq.s32.totalorder %s22, 0
      %p70 = por %p68, %p69
      %s72 = sadd.s32 %s71, 1
      %p75 = scmp.eq.s32.totalorder %s16, 4
      %p76 = scmp.ne.s32.totalorder %s71, %s73
      %p77 = scmp.eq.s32.totalorder %s16, 0
      %p78 = por %p76, %p77
      %p79 = scmp.ne.s32.totalorder %s71, %s73
      %p80 = scmp.eq.s32.totalorder %s21, 4
      %p81 = por %p79, %p80
      %p82 = scmp.ne.s32.totalorder %s73, %s74
      %p83 = scmp.eq.s32.totalorder %s21, 0
      %p84 = por %p82, %p83
      %p85 = scmp.ne.s32.totalorder %s73, %s74
      %p86 = scmp.eq.s32.totalorder %s22, 4
      %p87 = por %p85, %p86
      %p89 = scmp.ne.s32.totalorder %s74, %s88
      %p90 = scmp.eq.s32.totalorder %s22, 0
      %p91 = por %p89, %p90
      %s92 = ssub.s32 %s16, %s23
      %p93 = scmp.eq.s32.totalorder %s92, 0
      %s95 = sadd.s32 %s94, 1
      %s96 = scalar_select %p93, %s94, %s95
      %p99 = pneg %p93
      %p100 = scmp.eq.s32.totalorder %s16, 4
      %p101 = por %p99, %p100
      %p102 = scmp.ne.s32.totalorder %s94, %s97
      %p103 = scmp.eq.s32.totalorder %s16, 0
      %p104 = por %p102, %p103
      %p105 = scmp.ne.s32.totalorder %s94, %s97
      %p106 = scmp.eq.s32.totalorder %s21, 4
      %p107 = por %p105, %p106
      %p108 = scmp.ne.s32.totalorder %s97, %s98
      %p109 = scmp.eq.s32.totalorder %s21, 0
      %p110 = por %p108, %p109
      %p111 = scmp.ne.s32.totalorder %s97, %s98
      %p112 = scmp.eq.s32.totalorder %s22, 4
      %p113 = por %p111, %p112
      %p115 = scmp.ne.s32.totalorder %s98, %s114
      %p116 = scmp.eq.s32.totalorder %s22, 0
      %p117 = por %p115, %p116
      %p118 = scmp.le.s32.totalorder 1, %s16
      %p119 = scmp.lt.s32.totalorder %s16, 6
      %p120 = pnand %p118, %p119
      %p121 = pneg %p120
      // Predicated region
      $region9: #{tpu_custom_call.1} parent=5 // pred_check
        _
      $region10: #{tpu_custom_call.1} parent=5 // pred_check_branch
        %123 = sbr.rel (%p120) target = $region12
      $region11: #{tpu_custom_call.1} parent=5 // pred_region
        %s124 = ssub.s32 %s16, 1
        // Predicated region
        $region13: #{tpu_custom_call.1} parent=11 // pred_check
          %p125 = pneg %p63
        $region14: #{tpu_custom_call.1} parent=11 // pred_check_branch
          %127 = sbr.rel (%p125) target = $region16
        $region15: #{tpu_custom_call.1} parent=11 // pred_region
          %129 = vsyncadd [#allocation6], 0
          %s131 = sshll.u32 %s1, 4
          %s132 = int_to_ptr.hbm [resolvable:$true] %s131
          %s133 = sshll.u32 [#allocation5], 4
          %s134 = int_to_ptr.vmem [resolvable:$true] %s133
          %136 = dma.hbm_to_vmem [thread:$0]  %s132, 32, %s134, [#allocation6]
        $region16: #{tpu_custom_call.1} parent=11 // pred_fallthru
          _
        // Predicated region
        $region17: #{tpu_custom_call.1} parent=11 // pred_check
          %p137 = pneg %p84
        $region18: #{tpu_custom_call.1} parent=11 // pred_check_branch
          %139 = sbr.rel (%p137) target = $region20
        $region19: #{tpu_custom_call.1} parent=11 // pred_region
          %141 = vsyncadd [#allocation6], 0
          %s143 = sshll.u32 %s2, 4
          %s144 = int_to_ptr.hbm [resolvable:$true] %s143
          %s145 = sshll.u32 [#allocation7], 4
          %s146 = int_to_ptr.vmem [resolvable:$true] %s145
          %148 = dma.hbm_to_vmem [thread:$0]  %s144, 32, %s146, [#allocation6]
        $region20: #{tpu_custom_call.1} parent=11 // pred_fallthru
          _
      $region12: #{tpu_custom_call.1} parent=5 // pred_fallthru
        _
      %p149 = scmp.lt.s32.totalorder %s16, 5
      // Predicated region
      $region21: #{tpu_custom_call.1} parent=5 // pred_check
        %p150 = pneg %p149
      $region22: #{tpu_custom_call.1} parent=5 // pred_check_branch
        %152 = sbr.rel (%p150) target = $region24
      $region23: #{tpu_custom_call.1} parent=5 // pred_region
        // Predicated region
        $region25: #{tpu_custom_call.1} parent=23 // pred_check
          %p153 = pneg %p36
        $region26: #{tpu_custom_call.1} parent=23 // pred_check_branch
          %155 = sbr.rel (%p153) target = $region28
        $region27: #{tpu_custom_call.1} parent=23 // pred_region
          %s156 = sand.u32 %s26, 1
          %s157 = scalar_lea.sflag [#allocation3], %s156
          %s158 = sand.u32 %s26, 1
          %s159 = smul.addr %s158, 32
          %s160 = scalar_lea.vmem [#allocation2], %s159
          %162 = vsyncadd %s157, 0
          %s163 = smul.addr %s16, 2
          %s164 = smul.addr %s163, 8
          %s165 = scalar_lea.hbm %s0, %s164
          %s166 = sshll.u32 %s165, 4
          %s167 = int_to_ptr.hbm [resolvable:$true] %s166
          %s168 = sshll.u32 %s160, 4
          %s169 = int_to_ptr.vmem [resolvable:$true] %s168
          %174 = dma.hbm_to_vmem [thread:$0]  %s167, 512, %s169, %s157, 1280, 256, 16
        $region28: #{tpu_custom_call.1} parent=23 // pred_fallthru
          _
      $region24: #{tpu_custom_call.1} parent=5 // pred_fallthru
        _
      %p175 = scmp.le.s32.totalorder 1, %s16
      %p176 = scmp.lt.s32.totalorder %s16, 6
      %p177 = pnand %p175, %p176
      %p178 = pneg %p177
      // Predicated region
      $region29: #{tpu_custom_call.1} parent=5 // pred_check
        _
      $region30: #{tpu_custom_call.1} parent=5 // pred_check_branch
        %180 = sbr.rel (%p177) target = $region32
      $region31: #{tpu_custom_call.1} parent=5 // pred_region
        %s181 = ssub.s32 %s16, 1
        %s182 = sand.u32 %s29, 1
        %s183 = scalar_lea.sflag [#allocation3], %s182
        %s184 = sand.u32 %s29, 1
        %s185 = smul.addr %s184, 32
        %s186 = scalar_lea.vmem [#allocation2], %s185
        // Predicated region
        $region33: #{tpu_custom_call.1} parent=31 // pred_check
          %p187 = pneg %p42
        $region34: #{tpu_custom_call.1} parent=31 // pred_check_branch
          %189 = sbr.rel (%p187) target = $region36
        $region35: #{tpu_custom_call.1} parent=31 // pred_region
          %191 = dma.done %s183, 512
        $region36: #{tpu_custom_call.1} parent=31 // pred_fallthru
          _
        // Predicated region
        $region37: #{tpu_custom_call.1} parent=31 // pred_check
          %p192 = pneg %p63
        $region38: #{tpu_custom_call.1} parent=31 // pred_check_branch
          %194 = sbr.rel (%p192) target = $region40
        $region39: #{tpu_custom_call.1} parent=31 // pred_region
          %196 = dma.done [#allocation6], 32
        $region40: #{tpu_custom_call.1} parent=31 // pred_fallthru
          _
        // Predicated region
        $region41: #{tpu_custom_call.1} parent=31 // pred_check
          %p197 = pneg %p84
        $region42: #{tpu_custom_call.1} parent=31 // pred_check_branch
          %199 = sbr.rel (%p197) target = $region44
        $region43: #{tpu_custom_call.1} parent=31 // pred_region
          %201 = dma.done [#allocation6], 32
        $region44: #{tpu_custom_call.1} parent=31 // pred_fallthru
          _
        %s202 = sand.u32 %s29, 1
        %s203 = scalar_lea.sflag [#allocation3], %s202
        %s204 = sand.u32 %s29, 1
        %s205 = smul.addr %s204, 32
        %s206 = scalar_lea.vmem [#allocation2], %s205
        %p207 = pneg %p42
        %p208 = pneg %p39
        %p209 = pneg %p63
        %p210 = pneg %p60
        %p211 = pneg %p84
        %p212 = pneg %p81
        %p213 = pneg %p110
        %p214 = pneg %p107
        %s215 = sand.u32 %s97, 1
        %s216 = scalar_lea.sflag [#allocation4], %s215
        %s217 = sand.u32 %s97, 1
        %s218 = smul.addr %s217, 32
        %s219 = scalar_lea.vmem [#allocation8], %s218
        %s220 = smul.u32 %s21, 8
        %v221 = vlaneseq
        %v222 = vshrl.u32 %v221, 7
        %v223 = vstv %s220
        %v224 = vadd.s32 %v222, %v223
        %vm225 = vcmp.lt.s32.totalorder %v224, 39
        %v226 = vld [vmem:[#allocation5] sm:$0x3]
        %v228 = vperm.slane %v226, 0
        %v229 = vperm.slane %v226, 1
        %v232 = vsel %vm225, %v228, 0.0
        %v233 = vsel %vm225, %v229, 0.0
        %vm234 = vcmp.ge.s32.totalorder %v224, 1
        %v235 = vld [vmem:[#allocation7] sm:$0x3]
        %v237 = vperm.slane %v235, 0
        %v238 = vperm.slane %v235, 1
        %v241 = vsel %vm234, %v237, 0.0
        %v242 = vsel %vm234, %v238, 0.0
        %v243 = vld [vmem:[%s186] sm:$0xff]
        %v244 = vld [vmem:[%s186 + $0x8] sm:$0xff]
        %v245 = vld [vmem:[%s186 + $0x10] sm:$0xff]
        %v246 = vld [vmem:[%s186 + $0x18] sm:$0xff]
        %v247 = vmul.f32 %v243, %v232
        %v248 = vmul.f32 %v244, %v233
        %v249 = vmul.f32 %v245, %v232
        %v250 = vmul.f32 %v246, %v233
        %v251 = vmul.f32 %v243, %v241
        %v252 = vmul.f32 %v244, %v242
        %v253 = vmul.f32 %v245, %v241
        %v254 = vmul.f32 %v246, %v242
        %v255 = vadd.f32 %v247, %v251
        %v256 = vadd.f32 %v248, %v252
        %v257 = vadd.f32 %v249, %v253
        %v258 = vadd.f32 %v250, %v254
        %259 = vst [vmem:[%s219] sm:$0xff] %v255
        %260 = vst [vmem:[%s219 + $0x8] sm:$0xff] %v256
        %261 = vst [vmem:[%s219 + $0x10] sm:$0xff] %v257
        %262 = vst [vmem:[%s219 + $0x18] sm:$0xff] %v258
        %s263 = sand.u32 %s97, 1
        %s264 = scalar_lea.sflag [#allocation4], %s263
        %s265 = sand.u32 %s97, 1
        %s266 = smul.addr %s265, 32
        %s267 = scalar_lea.vmem [#allocation8], %s266
        // Predicated region
        $region45: #{tpu_custom_call.1} parent=31 // pred_check
          %p268 = pneg %p107
        $region46: #{tpu_custom_call.1} parent=31 // pred_check_branch
          %270 = sbr.rel (%p268) target = $region48
        $region47: #{tpu_custom_call.1} parent=31 // pred_region
          %272 = vsyncadd %s264, 0
          %s273 = smul.addr %s21, 2
          %s274 = smul.addr %s273, 8
          %s275 = scalar_lea.hbm %s3, %s274
          %s276 = sshll.u32 %s267, 4
          %s277 = int_to_ptr.vmem [resolvable:$true] %s276
          %s278 = sshll.u32 %s275, 4
          %s279 = int_to_ptr.hbm [resolvable:$true] %s278
          %284 = dma.vmem_to_hbm [thread:$0]  %s277, 512, %s279, %s264, 256, 1280, 16
        $region48: #{tpu_custom_call.1} parent=31 // pred_fallthru
          _
      $region32: #{tpu_custom_call.1} parent=5 // pred_fallthru
        _
      %p285 = scmp.le.s32.totalorder 2, %s16
      // Predicated region
      $region49: #{tpu_custom_call.1} parent=5 // pred_check
        %p286 = pneg %p285
      $region50: #{tpu_custom_call.1} parent=5 // pred_check_branch
        %288 = sbr.rel (%p286) target = $region52
      $region51: #{tpu_custom_call.1} parent=5 // pred_region
        %s289 = ssub.s32 %s16, 2
        // Predicated region
        $region53: #{tpu_custom_call.1} parent=51 // pred_check
          %p290 = pneg %p113
        $region54: #{tpu_custom_call.1} parent=51 // pred_check_branch
          %292 = sbr.rel (%p290) target = $region56
        $region55: #{tpu_custom_call.1} parent=51 // pred_region
          %s293 = sand.u32 %s98, 1
          %s294 = scalar_lea.sflag [#allocation4], %s293
          %s295 = sand.u32 %s98, 1
          %s296 = smul.addr %s295, 32
          %s297 = scalar_lea.vmem [#allocation8], %s296
          %299 = dma.done %s294, 512
        $region56: #{tpu_custom_call.1} parent=51 // pred_fallthru
          _
      $region52: #{tpu_custom_call.1} parent=5 // pred_fallthru
        _
    $region6: #{tpu_custom_call.1} parent=1 // loop_footer
      %s20 = sadd.s32 1, %s16
    $region7: #{tpu_custom_call.1} parent=1 // loop_footer_branch
      %15 = sbr.rel target = $region3
    $region8: #{tpu_custom_call.1} parent=1 // loop_exit
      _
    %300 = vsyncpa [#allocation3], 1
    %s301 = scalar_lea.sflag [#allocation3], 1
    %302 = vsyncpa %s301, 1
    %303 = vsyncpa [#allocation6], 1
    %304 = vsyncpa [#allocation4], 1
    %s305 = scalar_lea.sflag [#allocation4], 1
    %306 = vsyncpa %s305, 1

</llo_original>
